<compile_context>
chip_gen: v6e
topology: v6e:2x2x1
jax: 0.10.0
libtpu: 0.0.40
codegen_flags: <defaults>
</compile_context>

<pallas_src>
import functools

import jax
import jax.numpy as jnp
from jax.experimental import pallas as pl
from jax.experimental.pallas import tpu as pltpu


def _round_up(x, m):
    return (x + m - 1) // m * m


def _sigmoid_mul_kernel(s_ref, x_ref, o_ref, *, tm):
    # s_ref: (padded_rows, 1) full gate-logit column, grid-invariant (resident
    #        in VMEM, DMA'd once for the whole grid).
    # x_ref: (tm, HW) feature-map rows for this grid step.
    # o_ref: (tm, HW) output rows.
    i = pl.program_id(0)
    start = pl.multiple_of(i * tm, 8)
    logits = s_ref[pl.ds(start, tm), :]                      # (tm, 1)
    # Sigmoid in f32 (v5e EUP has no bf16), then multiply in native dtype so
    # HBM traffic stays at the input width (bf16-friendly).
    gate = jax.nn.sigmoid(logits.astype(jnp.float32)).astype(o_ref.dtype)
    o_ref[...] = x_ref[...] * gate                           # lane-broadcast


def sigmoid_mul(x641, x645, *, n_blocks=2):
    """x641: (N, C, H, W), x645: (N, C, 1, 1) -> (N, C, H, W)."""
    N, C, H, W = x641.shape
    assert x645.shape == (N, C, 1, 1)
    rows = N * C
    hw = H * W

    x2d = x641.reshape(rows, hw)
    s2d = x645.reshape(rows, 1)

    # 1-2 big blocks. At the production shape [1, 3456, 7, 7] each block is
    # only ~0.34 MB f32, so even double-buffered in+out it is far under the
    # scoped VMEM default on every generation (16/32/32 MiB).
    if rows >= 16:
        n_blocks = max(1, min(n_blocks, rows // 8))
    else:
        n_blocks = 1
    tm = _round_up(pl.cdiv(rows, n_blocks), 8)
    grid = (pl.cdiv(rows, tm),)
    padded_rows = grid[0] * tm

    # Pad the gate column so the in-kernel pl.ds slice of the resident gate
    # never reads out of bounds for a partial last block.
    if padded_rows != rows:
        s2d = jnp.pad(s2d, ((0, padded_rows - rows), (0, 0)))

    itemsize = jnp.dtype(x641.dtype).itemsize
    cost = pl.CostEstimate(
        flops=2 * rows * hw,
        transcendentals=rows,
        bytes_accessed=(2 * rows * hw) * itemsize + rows * jnp.dtype(x645.dtype).itemsize,
    )

    out2d = pl.pallas_call(
        functools.partial(_sigmoid_mul_kernel, tm=tm),
        out_shape=jax.ShapeDtypeStruct((rows, hw), x641.dtype),
        grid_spec=pltpu.PrefetchScalarGridSpec(
            num_scalar_prefetch=0,
            grid=grid,
            in_specs=[
                # Full gate column, grid-invariant -> fetched once, resident.
                pl.BlockSpec((padded_rows, 1), lambda i: (0, 0)),
                # Feature map rows, one big block per grid step.
                pl.BlockSpec((tm, hw), lambda i: (i, 0)),
            ],
            out_specs=pl.BlockSpec((tm, hw), lambda i: (i, 0)),
        ),
        compiler_params=pltpu.CompilerParams(
            dimension_semantics=("parallel",),
        ),
        cost_estimate=cost,
    )(s2d, x2d)

    return out2d.reshape(N, C, H, W)


if __name__ == "__main__":
    key = jax.random.PRNGKey(0)
    k1, k2 = jax.random.split(key)

    # Small shapes consistent with the module's forward (NCHW feature map +
    # per-channel [N, C, 1, 1] gate), scaled down from [1, 3456, 7, 7].
    N, C, H, W = 2, 128, 8, 8
    x641 = jax.random.normal(k1, (N, C, H, W), dtype=jnp.float32)
    x645 = jax.random.normal(k2, (N, C, 1, 1), dtype=jnp.float32)

    out = sigmoid_mul(x641, x645)
    out = jax.block_until_ready(out)

    # Reference check in plain JAX.
    ref = x641 * jax.nn.sigmoid(x645)
    assert out.shape == (N, C, H, W)
    assert jnp.allclose(out, ref, atol=1e-6, rtol=1e-6)

    print("KERNEL_OK")
</pallas_src>

<mosaic_0001>
module attributes {stable_mosaic.version = 11 : i64} {
  func.func @_sigmoid_mul_kernel(%arg0: i32, %arg1: memref<256x1xf32, #tpu.memory_space<vmem>>, %arg2: memref<128x64xf32, #tpu.memory_space<vmem>>, %arg3: memref<128x64xf32, #tpu.memory_space<vmem>>) attributes {dimension_semantics = [#tpu.dimension_semantics<parallel>], iteration_bounds = array<i64: 2>, scalar_prefetch = 0 : i64, scratch_operands = 0 : i64, tpu.core_type = #tpu.core_type<tc>, window_params = [{pipeline_mode = #tpu.pipeline_mode<synchronous>, transform_indices = @transform_0, window_bounds = array<i64: 256, 1>}, {transform_indices = @transform_1, window_bounds = array<i64: 128, 64>}, {transform_indices = @transform_2, window_bounds = array<i64: 128, 64>}]} {
    %c128_i32 = arith.constant 128 : i32
    %0 = arith.muli %arg0, %c128_i32 : i32
    %1 = tpu.assume_multiple %0, 8 : i32
    %2 = arith.index_cast %1 : i32 to index
    %c0 = arith.constant 0 : index
    %3 = vector.load %arg1[%2, %c0] : memref<256x1xf32, #tpu.memory_space<vmem>>, vector<128x1xf32>
    %4 = arith.negf %3 : vector<128x1xf32>
    %5 = math.exp %4 : vector<128x1xf32>
    %cst = arith.constant 1.000000e+00 : f32
    %6 = vector.broadcast %cst : f32 to vector<128x1xf32>
    %7 = arith.addf %6, %5 : vector<128x1xf32>
    %8 = arith.divf %6, %7 : vector<128x1xf32>
    %c0_0 = arith.constant 0 : index
    %c0_1 = arith.constant 0 : index
    %9 = vector.load %arg2[%c0_0, %c0_1] : memref<128x64xf32, #tpu.memory_space<vmem>>, vector<128x64xf32>
    %10 = vector.broadcast %8 : vector<128x1xf32> to vector<128x64xf32>
    %11 = arith.mulf %9, %10 : vector<128x64xf32>
    %c0_2 = arith.constant 0 : index
    %c0_3 = arith.constant 0 : index
    %12 = vector.load %arg3[%c0_2, %c0_3] : memref<128x64xf32, #tpu.memory_space<vmem>>, vector<128x64xf32>
    tpu.vector_store %arg3[%c0_2, %c0_3], %11 {strides = array<i32>} : memref<128x64xf32, #tpu.memory_space<vmem>>, vector<128x64xf32>,
    return
  }
  func.func @transform_0(%arg0: i32) -> (i32, i32) {
    %c0_i32 = arith.constant 0 : i32
    %c0_i32_0 = arith.constant 0 : i32
    %c0_i32_1 = arith.constant 0 : i32
    return %c0_i32, %c0_i32_0 : i32, i32
  }
  func.func @transform_1(%arg0: i32) -> (i32, i32) {
    %c0_i32 = arith.constant 0 : i32
    %c0_i32_0 = arith.constant 0 : i32
    return %arg0, %c0_i32 : i32, i32
  }
  func.func @transform_2(%arg0: i32) -> (i32, i32) {
    %c0_i32 = arith.constant 0 : i32
    %c0_i32_0 = arith.constant 0 : i32
    return %arg0, %c0_i32 : i32, i32
  }
}

</mosaic_0001>

<llo_original>
// kernel: tpu_custom_call.1
$region0: #{tpu_custom_call.1}
  #allocation0 [shape = 'u32[]', space=smem, size = 0x4, offset = 0x4, fixed_abs, tag = 'smem constant byte address 0x4 - core index']
  #allocation1 [shape = 'u32[144,128]{1,0:T(1,128)}', space=vmem, size = 0x12000, scoped, tag = 'internal scratch']
  %s0 = inlined_call_operand.vmem [shape: f32[256,1], index: 0, kind: input, shape index: {}]
  %s1 = inlined_call_operand.vmem [shape: f32[256,64], index: 1, kind: input, shape index: {}]
  %s2 = inlined_call_operand.vmem [shape: f32[256,64], index: 2, kind: output, shape index: {}]
  %s3 = sld [smem:[#allocation0]]
  $region41: #{tpu_custom_call.1} parent=0
    _
  %s5 = ssub.s32 1, %s3
  %s6 = scalar_select 0, %s5, %s3
  loop: start=0, step=1, limit=4
  $region2: #{tpu_custom_call.1} parent=0 // loop_pre_header
    _
  $region3: #{tpu_custom_call.1} parent=0 // loop_header
    %s8 = sphi 0, %s12
    %p9 = scmp.ge.s32.totalorder %s8, 4
    %s16 = sphi 0, %s16
    %s18 = sphi 0, %s16
    %s19 = sphi 0, %s18
    %s33 = sphi 0, %s19
    %s39 = sphi 0, %s41
    %s42 = sphi 0, %s39
    %s43 = sphi 0, %s42
    %s59 = sphi 0, %s43
    %s65 = sphi 0, %s67
    %s68 = sphi 0, %s65
    %s69 = sphi 0, %s68
    %s85 = sphi 0, %s69
  $region4: #{tpu_custom_call.1} parent=0 // loop_header_branch
    %11 = sbr.rel (%p9) target = $region8
  $region5: #{tpu_custom_call.1} parent=0 // loop_body
    %s13 = ssub.s32 %s8, 1
    %s14 = ssub.s32 %s8, 2
    %s15 = sadd.s32 %s8, 1
    %s17 = sadd.s32 %s16, 1
    %p20 = scmp.eq.s32.totalorder %s8, 1
    %p21 = scmp.ne.s32.totalorder %s16, %s18
    %p22 = scmp.eq.s32.totalorder %s8, 0
    %p23 = por %p21, %p22
    %p24 = scmp.ne.s32.totalorder %s16, %s18
    %p25 = scmp.eq.s32.totalorder %s13, 1
    %p26 = por %p24, %p25
    %p27 = scmp.ne.s32.totalorder %s18, %s19
    %p28 = scmp.eq.s32.totalorder %s13, 0
    %p29 = por %p27, %p28
    %p30 = scmp.ne.s32.totalorder %s18, %s19
    %p31 = scmp.eq.s32.totalorder %s14, 1
    %p32 = por %p30, %p31
    %p34 = scmp.ne.s32.totalorder %s19, %s33
    %p35 = scmp.eq.s32.totalorder %s14, 0
    %p36 = por %p34, %p35
    %s37 = ssub.s32 %s8, %s15
    %p38 = scmp.eq.s32.totalorder %s37, 0
    %s40 = sadd.s32 %s39, 1
    %s41 = scalar_select %p38, %s39, %s40
    %p44 = pneg %p38
    %p45 = scmp.eq.s32.totalorder %s8, 1
    %p46 = por %p44, %p45
    %p47 = scmp.ne.s32.totalorder %s39, %s42
    %p48 = scmp.eq.s32.totalorder %s8, 0
    %p49 = por %p47, %p48
    %p50 = scmp.ne.s32.totalorder %s39, %s42
    %p51 = scmp.eq.s32.totalorder %s13, 1
    %p52 = por %p50, %p51
    %p53 = scmp.ne.s32.totalorder %s42, %s43
    %p54 = scmp.eq.s32.totalorder %s13, 0
    %p55 = por %p53, %p54
    %p56 = scmp.ne.s32.totalorder %s42, %s43
    %p57 = scmp.eq.s32.totalorder %s14, 1
    %p58 = por %p56, %p57
    %p60 = scmp.ne.s32.totalorder %s43, %s59
    %p61 = scmp.eq.s32.totalorder %s14, 0
    %p62 = por %p60, %p61
    %s63 = ssub.s32 %s8, %s15
    %p64 = scmp.eq.s32.totalorder %s63, 0
    %s66 = sadd.s32 %s65, 1
    %s67 = scalar_select %p64, %s65, %s66
    %p70 = pneg %p64
    %p71 = scmp.eq.s32.totalorder %s8, 1
    %p72 = por %p70, %p71
    %p73 = scmp.ne.s32.totalorder %s65, %s68
    %p74 = scmp.eq.s32.totalorder %s8, 0
    %p75 = por %p73, %p74
    %p76 = scmp.ne.s32.totalorder %s65, %s68
    %p77 = scmp.eq.s32.totalorder %s13, 1
    %p78 = por %p76, %p77
    %p79 = scmp.ne.s32.totalorder %s68, %s69
    %p80 = scmp.eq.s32.totalorder %s13, 0
    %p81 = por %p79, %p80
    %p82 = scmp.ne.s32.totalorder %s68, %s69
    %p83 = scmp.eq.s32.totalorder %s14, 1
    %p84 = por %p82, %p83
    %p86 = scmp.ne.s32.totalorder %s69, %s85
    %p87 = scmp.eq.s32.totalorder %s14, 0
    %p88 = por %p86, %p87
    %p89 = scmp.le.s32.totalorder 1, %s8
    %p90 = scmp.lt.s32.totalorder %s8, 3
    %p91 = pnand %p89, %p90
    %p92 = pneg %p91
    // Predicated region
    $region9: #{tpu_custom_call.1} parent=5 // pred_check
      _
    $region10: #{tpu_custom_call.1} parent=5 // pred_check_branch
      %94 = sbr.rel (%p91) target = $region12
    $region11: #{tpu_custom_call.1} parent=5 // pred_region
      %s95 = ssub.s32 %s8, 1
      // Predicated region
      $region13: #{tpu_custom_call.1} parent=11 // pred_check
        %p96 = pneg %p29
      $region14: #{tpu_custom_call.1} parent=11 // pred_check_branch
        %98 = sbr.rel (%p96) target = $region16
      $region15: #{tpu_custom_call.1} parent=11 // pred_region
        _
      $region16: #{tpu_custom_call.1} parent=11 // pred_fallthru
        _
    $region12: #{tpu_custom_call.1} parent=5 // pred_fallthru
      _
    %p99 = scmp.lt.s32.totalorder %s8, 2
    // Predicated region
    $region17: #{tpu_custom_call.1} parent=5 // pred_check
      %p100 = pneg %p99
    $region18: #{tpu_custom_call.1} parent=5 // pred_check_branch
      %102 = sbr.rel (%p100) target = $region20
    $region19: #{tpu_custom_call.1} parent=5 // pred_region
      // Predicated region
      $region21: #{tpu_custom_call.1} parent=19 // pred_check
        %p103 = pneg %p49
      $region22: #{tpu_custom_call.1} parent=19 // pred_check_branch
        %105 = sbr.rel (%p103) target = $region24
      $region23: #{tpu_custom_call.1} parent=19 // pred_region
        %s106 = smul.u32 16, %s8
        %p107 = scmp.lt.s32.totalorder %s106, 31
        %s108 = scalar_select %p107, %s106, 31
        %s109 = smul.addr %s108, 8
        %s110 = scalar_lea.vmem %s1, %s109
        %s111 = smul.u32 16, %s8
      $region24: #{tpu_custom_call.1} parent=19 // pred_fallthru
        _
    $region20: #{tpu_custom_call.1} parent=5 // pred_fallthru
      _
    %p112 = scmp.le.s32.totalorder 1, %s8
    %p113 = scmp.lt.s32.totalorder %s8, 3
    %p114 = pnand %p112, %p113
    %p115 = pneg %p114
    // Predicated region
    $region25: #{tpu_custom_call.1} parent=5 // pred_check
      _
    $region26: #{tpu_custom_call.1} parent=5 // pred_check_branch
      %117 = sbr.rel (%p114) target = $region28
    $region27: #{tpu_custom_call.1} parent=5 // pred_region
      %s118 = ssub.s32 %s8, 1
      %p119 = pneg %p29
      %p120 = pneg %p26
      %s121 = smul.u32 16, %s13
      %p122 = scmp.lt.s32.totalorder %s121, 31
      %s123 = scalar_select %p122, %s121, 31
      %s124 = smul.addr %s123, 8
      %s125 = scalar_lea.vmem %s1, %s124
      %p126 = pneg %p55
      %p127 = pneg %p52
      %p128 = pneg %p81
      %p129 = pneg %p78
      %s130 = smul.u32 16, %s13
      %p131 = scmp.lt.s32.totalorder %s130, 31
      %s132 = scalar_select %p131, %s130, 31
      %s133 = smul.addr %s132, 8
      %s134 = scalar_lea.vmem %s2, %s133
      %s135 = smul.u32 16, %s13
      %p136 = scmp.lt.s32.totalorder %s135, 31
      %s137 = scalar_select %p136, %s135, 31
      %s138 = smul.addr %s137, 8
      %s139 = scalar_lea.vmem %s1, %s138
      %s140 = smul.u32 16, %s13
      %s141 = smul.u32 16, %s13
      %p142 = scmp.lt.s32.totalorder %s141, 31
      %s143 = scalar_select %p142, %s141, 31
      %s144 = smul.addr %s143, 8
      %s145 = scalar_lea.vmem %s2, %s144
      %s146 = smul.u32 16, %s13
      %s147 = smul.u32 %s13, 128
      %s148 = scalar_lea.vmem %s0, %s147
      %v149 = vld [vmem:[%s148] sm:$0xff]
      %v150 = vld [vmem:[%s148 + $0x8] sm:$0xff]
      %v151 = vld [vmem:[%s148 + $0x10] sm:$0xff]
      %v152 = vld [vmem:[%s148 + $0x18] sm:$0xff]
      %v153 = vld [vmem:[%s148 + $0x20] sm:$0xff]
      %v154 = vld [vmem:[%s148 + $0x28] sm:$0xff]
      %v155 = vld [vmem:[%s148 + $0x30] sm:$0xff]
      %v156 = vld [vmem:[%s148 + $0x38] sm:$0xff]
      %v157 = vld [vmem:[%s148 + $0x40] sm:$0xff]
      %v158 = vld [vmem:[%s148 + $0x48] sm:$0xff]
      %v159 = vld [vmem:[%s148 + $0x50] sm:$0xff]
      %v160 = vld [vmem:[%s148 + $0x58] sm:$0xff]
      %v161 = vld [vmem:[%s148 + $0x60] sm:$0xff]
      %v162 = vld [vmem:[%s148 + $0x68] sm:$0xff]
      %v163 = vld [vmem:[%s148 + $0x70] sm:$0xff]
      %v164 = vld [vmem:[%s148 + $0x78] sm:$0xff]
      %v165 = vxor.u32 %v149, 2147483648
      %v166 = vxor.u32 %v150, 2147483648
      %v167 = vxor.u32 %v151, 2147483648
      %v168 = vxor.u32 %v152, 2147483648
      %v169 = vxor.u32 %v153, 2147483648
      %v170 = vxor.u32 %v154, 2147483648
      %v171 = vxor.u32 %v155, 2147483648
      %v172 = vxor.u32 %v156, 2147483648
      %v173 = vxor.u32 %v157, 2147483648
      %v174 = vxor.u32 %v158, 2147483648
      %v175 = vxor.u32 %v159, 2147483648
      %v176 = vxor.u32 %v160, 2147483648
      %v177 = vxor.u32 %v161, 2147483648
      %v178 = vxor.u32 %v162, 2147483648
      %v179 = vxor.u32 %v163, 2147483648
      %v180 = vxor.u32 %v164, 2147483648
      %v181 = vmul.f32 %v165, 1.442695
      %v182 = vpow.pop %v181
      %v183 = vmul.f32 %v166, 1.442695
      %v184 = vpow.pop %v183
      %v185 = vmul.f32 %v167, 1.442695
      %v186 = vpow.pop %v185
      %v187 = vmul.f32 %v168, 1.442695
      %v188 = vpow.pop %v187
      %v189 = vmul.f32 %v169, 1.442695
      %v190 = vpow.pop %v189
      %v191 = vmul.f32 %v170, 1.442695
      %v192 = vpow.pop %v191
      %v193 = vmul.f32 %v171, 1.442695
      %v194 = vpow.pop %v193
      %v195 = vmul.f32 %v172, 1.442695
      %v196 = vpow.pop %v195
      %v197 = vmul.f32 %v173, 1.442695
      %v198 = vpow.pop %v197
      %v199 = vmul.f32 %v174, 1.442695
      %v200 = vpow.pop %v199
      %v201 = vmul.f32 %v175, 1.442695
      %v202 = vpow.pop %v201
      %v203 = vmul.f32 %v176, 1.442695
      %v204 = vpow.pop %v203
      %v205 = vmul.f32 %v177, 1.442695
      %v206 = vpow.pop %v205
      %v207 = vmul.f32 %v178, 1.442695
      %v208 = vpow.pop %v207
      %v209 = vmul.f32 %v179, 1.442695
      %v210 = vpow.pop %v209
      %v211 = vmul.f32 %v180, 1.442695
      %v212 = vpow.pop %v211
      %v213 = vadd.f32 %v182, 1.0
      %v214 = vadd.f32 %v184, 1.0
      %v215 = vadd.f32 %v186, 1.0
      %v216 = vadd.f32 %v188, 1.0
      %v217 = vadd.f32 %v190, 1.0
      %v218 = vadd.f32 %v192, 1.0
      %v219 = vadd.f32 %v194, 1.0
      %v220 = vadd.f32 %v196, 1.0
      %v221 = vadd.f32 %v198, 1.0
      %v222 = vadd.f32 %v200, 1.0
      %v223 = vadd.f32 %v202, 1.0
      %v224 = vadd.f32 %v204, 1.0
      %v225 = vadd.f32 %v206, 1.0
      %v226 = vadd.f32 %v208, 1.0
      %v227 = vadd.f32 %v210, 1.0
      %v228 = vadd.f32 %v212, 1.0
      %v229 = vrcp.pop %v213
      %v230 = vmul.f32 1.0, %v229
      %v231 = vrcp.pop %v214
      %v232 = vmul.f32 1.0, %v231
      %v233 = vrcp.pop %v215
      %v234 = vmul.f32 1.0, %v233
      %v235 = vrcp.pop %v216
      %v236 = vmul.f32 1.0, %v235
      %v237 = vrcp.pop %v217
      %v238 = vmul.f32 1.0, %v237
      %v239 = vrcp.pop %v218
      %v240 = vmul.f32 1.0, %v239
      %v241 = vrcp.pop %v219
      %v242 = vmul.f32 1.0, %v241
      %v243 = vrcp.pop %v220
      %v244 = vmul.f32 1.0, %v243
      %v245 = vrcp.pop %v221
      %v246 = vmul.f32 1.0, %v245
      %v247 = vrcp.pop %v222
      %v248 = vmul.f32 1.0, %v247
      %v249 = vrcp.pop %v223
      %v250 = vmul.f32 1.0, %v249
      %v251 = vrcp.pop %v224
      %v252 = vmul.f32 1.0, %v251
      %v253 = vrcp.pop %v225
      %v254 = vmul.f32 1.0, %v253
      %v255 = vrcp.pop %v226
      %v256 = vmul.f32 1.0, %v255
      %v257 = vrcp.pop %v227
      %v258 = vmul.f32 1.0, %v257
      %v259 = vrcp.pop %v228
      %v260 = vmul.f32 1.0, %v259
      %v261 = vld [vmem:[%s139] sm:$0xff]
      %v262 = vld [vmem:[%s139 + $0x8] sm:$0xff]
      %v263 = vld [vmem:[%s139 + $0x10] sm:$0xff]
      %v264 = vld [vmem:[%s139 + $0x18] sm:$0xff]
      %v265 = vld [vmem:[%s139 + $0x20] sm:$0xff]
      %v266 = vld [vmem:[%s139 + $0x28] sm:$0xff]
      %v267 = vld [vmem:[%s139 + $0x30] sm:$0xff]
      %v268 = vld [vmem:[%s139 + $0x38] sm:$0xff]
      %v269 = vld [vmem:[%s139 + $0x40] sm:$0xff]
      %v270 = vld [vmem:[%s139 + $0x48] sm:$0xff]
      %v271 = vld [vmem:[%s139 + $0x50] sm:$0xff]
      %v272 = vld [vmem:[%s139 + $0x58] sm:$0xff]
      %v273 = vld [vmem:[%s139 + $0x60] sm:$0xff]
      %v274 = vld [vmem:[%s139 + $0x68] sm:$0xff]
      %v275 = vld [vmem:[%s139 + $0x70] sm:$0xff]
      %v276 = vld [vmem:[%s139 + $0x78] sm:$0xff]
      %278 = vset.pattern.permute.xlu0 0
      %279 = vperm.xlu0 %278, %v230
      %v280 = vpop.permute.xlu0 %279
      %283 = vset.pattern.permute.xlu0 0
      %284 = vperm.xlu0 %283, %v232
      %v285 = vpop.permute.xlu0 %284
      %288 = vset.pattern.permute.xlu0 0
      %289 = vperm.xlu0 %288, %v234
      %v290 = vpop.permute.xlu0 %289
      %293 = vset.pattern.permute.xlu0 0
      %294 = vperm.xlu0 %293, %v236
      %v295 = vpop.permute.xlu0 %294
      %298 = vset.pattern.permute.xlu0 0
      %299 = vperm.xlu0 %298, %v238
      %v300 = vpop.permute.xlu0 %299
      %303 = vset.pattern.permute.xlu0 0
      %304 = vperm.xlu0 %303, %v240
      %v305 = vpop.permute.xlu0 %304
      %308 = vset.pattern.permute.xlu0 0
      %309 = vperm.xlu0 %308, %v242
      %v310 = vpop.permute.xlu0 %309
      %313 = vset.pattern.permute.xlu0 0
      %314 = vperm.xlu0 %313, %v244
      %v315 = vpop.permute.xlu0 %314
      %318 = vset.pattern.permute.xlu0 0
      %319 = vperm.xlu0 %318, %v246
      %v320 = vpop.permute.xlu0 %319
      %323 = vset.pattern.permute.xlu0 0
      %324 = vperm.xlu0 %323, %v248
      %v325 = vpop.permute.xlu0 %324
      %328 = vset.pattern.permute.xlu0 0
      %329 = vperm.xlu0 %328, %v250
      %v330 = vpop.permute.xlu0 %329
      %333 = vset.pattern.permute.xlu0 0
      %334 = vperm.xlu0 %333, %v252
      %v335 = vpop.permute.xlu0 %334
      %338 = vset.pattern.permute.xlu0 0
      %339 = vperm.xlu0 %338, %v254
      %v340 = vpop.permute.xlu0 %339
      %343 = vset.pattern.permute.xlu0 0
      %344 = vperm.xlu0 %343, %v256
      %v345 = vpop.permute.xlu0 %344
      %348 = vset.pattern.permute.xlu0 0
      %349 = vperm.xlu0 %348, %v258
      %v350 = vpop.permute.xlu0 %349
      %353 = vset.pattern.permute.xlu0 0
      %354 = vperm.xlu0 %353, %v260
      %v355 = vpop.permute.xlu0 %354
      %v357 = vmul.f32 %v261, %v280
      %v358 = vmul.f32 %v262, %v285
      %v359 = vmul.f32 %v263, %v290
      %v360 = vmul.f32 %v264, %v295
      %v361 = vmul.f32 %v265, %v300
      %v362 = vmul.f32 %v266, %v305
      %v363 = vmul.f32 %v267, %v310
      %v364 = vmul.f32 %v268, %v315
      %v365 = vmul.f32 %v269, %v320
      %v366 = vmul.f32 %v270, %v325
      %v367 = vmul.f32 %v271, %v330
      %v368 = vmul.f32 %v272, %v335
      %v369 = vmul.f32 %v273, %v340
      %v370 = vmul.f32 %v274, %v345
      %v371 = vmul.f32 %v275, %v350
      %v372 = vmul.f32 %v276, %v355
      %vm373 = vcmask 523264
      %374 = vst.msk [vmem:[%s145] sm:$0xff] %vm373, %v357
      %375 = vst.msk [vmem:[%s145 + $0x8] sm:$0xff] %vm373, %v358
      %376 = vst.msk [vmem:[%s145 + $0x10] sm:$0xff] %vm373, %v359
      %377 = vst.msk [vmem:[%s145 + $0x18] sm:$0xff] %vm373, %v360
      %378 = vst.msk [vmem:[%s145 + $0x20] sm:$0xff] %vm373, %v361
      %379 = vst.msk [vmem:[%s145 + $0x28] sm:$0xff] %vm373, %v362
      %380 = vst.msk [vmem:[%s145 + $0x30] sm:$0xff] %vm373, %v363
      %381 = vst.msk [vmem:[%s145 + $0x38] sm:$0xff] %vm373, %v364
      %382 = vst.msk [vmem:[%s145 + $0x40] sm:$0xff] %vm373, %v365
      %383 = vst.msk [vmem:[%s145 + $0x48] sm:$0xff] %vm373, %v366
      %384 = vst.msk [vmem:[%s145 + $0x50] sm:$0xff] %vm373, %v367
      %385 = vst.msk [vmem:[%s145 + $0x58] sm:$0xff] %vm373, %v368
      %386 = vst.msk [vmem:[%s145 + $0x60] sm:$0xff] %vm373, %v369
      %387 = vst.msk [vmem:[%s145 + $0x68] sm:$0xff] %vm373, %v370
      %388 = vst.msk [vmem:[%s145 + $0x70] sm:$0xff] %vm373, %v371
      %389 = vst.msk [vmem:[%s145 + $0x78] sm:$0xff] %vm373, %v372
      %s390 = smul.u32 16, %s13
      %p391 = scmp.lt.s32.totalorder %s390, 31
      %s392 = scalar_select %p391, %s390, 31
      %s393 = smul.addr %s392, 8
      %s394 = scalar_lea.vmem %s2, %s393
      // Predicated region
      $region29: #{tpu_custom_call.1} parent=27 // pred_check
        %p395 = pneg %p78
      $region30: #{tpu_custom_call.1} parent=27 // pred_check_branch
        %397 = sbr.rel (%p395) target = $region32
      $region31: #{tpu_custom_call.1} parent=27 // pred_region
        %s398 = smul.u32 16, %s13
      $region32: #{tpu_custom_call.1} parent=27 // pred_fallthru
        _
    $region28: #{tpu_custom_call.1} parent=5 // pred_fallthru
      _
    %p399 = scmp.le.s32.totalorder 2, %s8
    // Predicated region
    $region33: #{tpu_custom_call.1} parent=5 // pred_check
      %p400 = pneg %p399
    $region34: #{tpu_custom_call.1} parent=5 // pred_check_branch
      %402 = sbr.rel (%p400) target = $region36
    $region35: #{tpu_custom_call.1} parent=5 // pred_region
      %s403 = ssub.s32 %s8, 2
      // Predicated region
      $region37: #{tpu_custom_call.1} parent=35 // pred_check
        %p404 = pneg %p84
      $region38: #{tpu_custom_call.1} parent=35 // pred_check_branch
        %406 = sbr.rel (%p404) target = $region40
      $region39: #{tpu_custom_call.1} parent=35 // pred_region
        %s407 = smul.u32 16, %s14
        %p408 = scmp.lt.s32.totalorder %s407, 31
        %s409 = scalar_select %p408, %s407, 31
        %s410 = smul.addr %s409, 8
        %s411 = scalar_lea.vmem %s2, %s410
      $region40: #{tpu_custom_call.1} parent=35 // pred_fallthru
        _
    $region36: #{tpu_custom_call.1} parent=5 // pred_fallthru
      _
  $region6: #{tpu_custom_call.1} parent=0 // loop_footer
    %s12 = sadd.s32 1, %s8
  $region7: #{tpu_custom_call.1} parent=0 // loop_footer_branch
    %7 = sbr.rel target = $region3
  $region8: #{tpu_custom_call.1} parent=0 // loop_exit
    _

</llo_original>
